<compile_context>
chip_gen: v6e
topology: v6e:2x2x1
jax: 0.10.0
libtpu: 0.0.40
codegen_flags: <defaults>
</compile_context>

<pallas_src>
import jax
import jax.numpy as jnp
from jax.experimental import pallas as pl
from jax.experimental.pallas import tpu as pltpu


# ----------------------------- configuration --------------------------------
PATCH = 4          # patch size (ViT-L/14 uses 14; small synthetic analogue)
WIDTH = 128        # transformer width (ViT-L/14 uses 1024) -- lane-dense
OUT_DIM = 128      # embedding dim (ViT-L/14 projects to 768) -- lane-dense
MASK_MEAN = 0.5    # Normalize(0.5, 0.26) from mask_transform
MASK_STD = 0.26
LN_EPS = 1e-5


# ------------------------------- kernel --------------------------------------
def _alpha_clip_visual_kernel(
    patch_ref,   # [2B*N, DP]       bf16  (template rows then search rows)
    w_ref,       # [DP, WIDTH]      bf16  (fused image+alpha patch-embed weight)
    posb_ref,    # [N, WIDTH]       f32   (pos-emb + folded alpha-Normalize bias)
    gb_ref,      # [2, WIDTH]       f32   (row 0 = gamma, row 1 = beta)
    proj_ref,    # [WIDTH, OUT_DIM] bf16
    out_ref,     # [2B, OUT_DIM]    f32
):
    n = posb_ref.shape[0]            # patches per image
    m = patch_ref.shape[0]           # 2B*N rows
    g = m // n                       # 2B images (template + search)

    # Patch embedding: ONE MXU contraction for all 2B images (bf16 x bf16,
    # f32 accumulate).
    x = jnp.dot(patch_ref[...], w_ref[...],
                preferred_element_type=jnp.float32)            # [2B*N, WIDTH]

    # Positional embedding + folded alpha bias, batch-broadcast in VMEM
    # (no batch-tiled HBM copy).  N is a multiple of 8 and WIDTH == 128, so
    # the reshape is layout-neutral.
    x = x.reshape(g, n, WIDTH) + posb_ref[...][None]           # [2B, N, WIDTH]

    # LayerNorm over features: single-pass sum / sum-of-squares, all f32
    # (v5e has no bf16 VPU).
    s = jnp.sum(x, axis=-1, keepdims=True)
    s2 = jnp.sum(x * x, axis=-1, keepdims=True)
    mu = s * (1.0 / WIDTH)
    var = s2 * (1.0 / WIDTH) - mu * mu
    gb = gb_ref[...]                                           # [2, WIDTH]
    gamma = gb[0:1, :][None]                                   # [1, 1, WIDTH]
    beta = gb[1:2, :][None]
    xn = (x - mu) * jax.lax.rsqrt(var + LN_EPS) * gamma + beta

    # Global pool over patches per image: sublane-group mean on the VPU/XLU
    # (class-token stand-in) -- no MXU round trip in the dependency chain.
    pooled = jnp.mean(xn, axis=1)                              # [2B, WIDTH]

    # Output projection (bf16 MXU operands, f32 accumulation).
    feat = jnp.dot(pooled.astype(jnp.bfloat16), proj_ref[...],
                   preferred_element_type=jnp.float32)         # [2B, OUT_DIM]

    # feat = feat / feat.norm(dim=-1, keepdim=True): single EUP rsqrt.
    # (No eps, matching the PyTorch module's feat / feat.norm() exactly.)
    inv = jax.lax.rsqrt(jnp.sum(feat * feat, axis=-1, keepdims=True))
    out_ref[...] = feat * inv                                  # lane-dense store


# ------------------------------ glue / wrapper --------------------------------
def _extract_patches(x, ps):
    """NCHW -> [B, num_patches, C*ps*ps] (stride=ps conv unfold).
    NOTE: at real ViT-L/14 scale this transpose should move into the kernel via
    strided HBM reads; at this toy scale it is negligible."""
    B, C, H, W = x.shape
    x = x.reshape(B, C, H // ps, ps, W // ps, ps)
    x = x.transpose(0, 2, 4, 1, 3, 5)        # B, Hp, Wp, C, ps, ps
    return x.reshape(B, (H // ps) * (W // ps), C * ps * ps)


def prepare_params(params):
    """One-time parameter preparation (kept OUT of the jitted forward).

    Folds the mask_transform Normalize(0.5, 0.26) into the alpha patch-embed
    weight + an additive bias ((a-m)/s @ W == a @ (W/s) - (m/s)*sum_rows(W)),
    fuses the image + alpha patch-embed convs into one weight, casts MXU
    operands to bf16, and merges gamma/beta into a single slab."""
    w_alpha_eff = (params["w_alpha"] * (1.0 / MASK_STD)).astype(jnp.bfloat16)
    w_comb = jnp.concatenate(
        [params["w_img"].astype(jnp.bfloat16), w_alpha_eff], axis=0)  # [DP, WIDTH]
    # Bias derived from the bf16-ROUNDED weight so the fold matches what the
    # MXU actually multiplies.
    alpha_bias = (-MASK_MEAN) * jnp.sum(
        w_alpha_eff.astype(jnp.float32), axis=0, keepdims=True)       # [1, WIDTH]
    return {
        "w_comb": w_comb,                                             # bf16
        "posb": params["pos"] + alpha_bias,                           # [N, WIDTH] f32
        "gb": jnp.concatenate([params["gamma"], params["beta"]], 0),  # [2, WIDTH] f32
        "proj": params["proj"].astype(jnp.bfloat16),                  # [WIDTH, OUT]
    }


@jax.jit
def nlp_embedding_forward(template, template_mask, search, search_mask, prepared):
    """Mirrors NLP_embedding.forward: returns (tem_feat_batch, sea_feat_batch),
    each [B, OUT_DIM], L2-normalized along the last axis.  Template and search
    are processed by ONE Pallas invocation (single kernel step, M = 2*B*N)."""
    B = template.shape[0]

    def prep(img, msk):
        ip = _extract_patches(img.astype(jnp.float32), PATCH)   # [B, N, 3*ps*ps]
        ap = _extract_patches(msk.astype(jnp.float32), PATCH)   # [B, N, ps*ps]
        p = jnp.concatenate([ip, ap], axis=-1)                  # [B, N, DP]
        return p.reshape(B * p.shape[1], p.shape[2])            # [B*N, DP]

    # Template rows first, then search rows: one [2B*N, DP] slab.
    patches = jnp.concatenate(
        [prep(template, template_mask), prep(search, search_mask)],
        axis=0).astype(jnp.bfloat16)                             # [2B*N, DP]

    vmem = pl.BlockSpec(memory_space=pltpu.MemorySpace.VMEM)
    out = pl.pallas_call(
        _alpha_clip_visual_kernel,
        out_shape=jax.ShapeDtypeStruct((2 * B, OUT_DIM), jnp.float32),
        in_specs=[vmem, vmem, vmem, vmem, vmem],
        out_specs=vmem,
    )(patches, prepared["w_comb"], prepared["posb"], prepared["gb"],
      prepared["proj"])

    return out[:B], out[B:]


def init_params(key):
    dp_img = 3 * PATCH * PATCH
    dp_alpha = PATCH * PATCH
    H = W = 16
    n_patches = (H // PATCH) * (W // PATCH)
    ks = jax.random.split(key, 4)
    return {
        "w_img": 0.05 * jax.random.normal(ks[0], (dp_img, WIDTH), jnp.float32),
        "w_alpha": 0.05 * jax.random.normal(ks[1], (dp_alpha, WIDTH), jnp.float32),
        "pos": 0.02 * jax.random.normal(ks[2], (n_patches, WIDTH), jnp.float32),
        "gamma": jnp.ones((1, WIDTH), jnp.float32),
        "beta": jnp.zeros((1, WIDTH), jnp.float32),
        "proj": 0.05 * jax.random.normal(ks[3], (WIDTH, OUT_DIM), jnp.float32),
    }


if __name__ == "__main__":
    key = jax.random.PRNGKey(0)
    k_params, k_t, k_tm, k_s, k_sm = jax.random.split(key, 5)
    params = init_params(k_params)
    prepared = prepare_params(params)          # one-time, outside the jit

    B, H, W = 2, 16, 16
    # Inputs analogous to preprocessed CLIP image tensors (NCHW) + binary masks.
    template = jax.random.uniform(k_t, (B, 3, H, W), jnp.float32)
    template_mask = (jax.random.uniform(k_tm, (B, 1, H, W)) > 0.5).astype(jnp.float32)
    search = jax.random.uniform(k_s, (B, 3, H, W), jnp.float32)
    search_mask = (jax.random.uniform(k_sm, (B, 1, H, W)) > 0.5).astype(jnp.float32)

    tem_feat, sea_feat = nlp_embedding_forward(
        template, template_mask, search, search_mask, prepared)
    jax.block_until_ready((tem_feat, sea_feat))

    # Sanity: outputs are unit-norm along dim=-1 (as in the PyTorch module).
    tn = jnp.linalg.norm(tem_feat, axis=-1)
    sn = jnp.linalg.norm(sea_feat, axis=-1)
    assert tem_feat.shape == (B, OUT_DIM) and sea_feat.shape == (B, OUT_DIM)
    assert bool(jnp.all(jnp.isfinite(tem_feat)) & jnp.all(jnp.isfinite(sea_feat)))
    assert bool(jnp.all(jnp.abs(tn - 1.0) < 1e-3) & jnp.all(jnp.abs(sn - 1.0) < 1e-3))

    print("KERNEL_OK")
</pallas_src>

<mosaic_0001>
module attributes {stable_mosaic.version = 11 : i64} {
  func.func @_alpha_clip_visual_kernel(%arg0: memref<64x64xbf16, #tpu.memory_space<vmem>>, %arg1: memref<64x128xbf16, #tpu.memory_space<vmem>>, %arg2: memref<16x128xf32, #tpu.memory_space<vmem>>, %arg3: memref<2x128xf32, #tpu.memory_space<vmem>>, %arg4: memref<128x128xbf16, #tpu.memory_space<vmem>>, %arg5: memref<4x128xf32, #tpu.memory_space<vmem>>) attributes {dimension_semantics = [], scalar_prefetch = 0 : i64, scratch_operands = 0 : i64, tpu.core_type = #tpu.core_type<tc>} {
    %c0 = arith.constant 0 : index
    %c0_0 = arith.constant 0 : index
    %0 = vector.load %arg0[%c0, %c0_0] : memref<64x64xbf16, #tpu.memory_space<vmem>>, vector<64x64xbf16>
    %c0_1 = arith.constant 0 : index
    %c0_2 = arith.constant 0 : index
    %1 = vector.load %arg1[%c0_1, %c0_2] : memref<64x128xbf16, #tpu.memory_space<vmem>>, vector<64x128xbf16>
    %cst = arith.constant dense<0.000000e+00> : vector<64x128xf32>
    %2 = tpu.matmul %0, %1, %cst {dimension_numbers = #tpu.dot_dimension_numbers<[1], [0], [0], [1], [0, 0, 1, 1], [], []>} : vector<64x64xbf16>, vector<64x128xbf16>, vector<64x128xf32> -> vector<64x128xf32>
    %3 = vector.shape_cast %2 : vector<64x128xf32> to vector<4x16x128xf32>
    %c0_3 = arith.constant 0 : index
    %c0_4 = arith.constant 0 : index
    %4 = vector.load %arg2[%c0_3, %c0_4] : memref<16x128xf32, #tpu.memory_space<vmem>>, vector<16x128xf32>
    %5 = vector.shape_cast %4 : vector<16x128xf32> to vector<1x16x128xf32>
    %6 = vector.broadcast %5 : vector<1x16x128xf32> to vector<4x16x128xf32>
    %7 = arith.addf %3, %6 : vector<4x16x128xf32>
    %cst_5 = arith.constant dense<0.000000e+00> : vector<4x16xf32>
    %8 = vector.multi_reduction <add>, %7, %cst_5 [2] : vector<4x16x128xf32> to vector<4x16xf32>
    %9 = vector.shape_cast %8 : vector<4x16xf32> to vector<4x16x1xf32>
    %10 = arith.mulf %7, %7 : vector<4x16x128xf32>
    %cst_6 = arith.constant dense<0.000000e+00> : vector<4x16xf32>
    %11 = vector.multi_reduction <add>, %10, %cst_6 [2] : vector<4x16x128xf32> to vector<4x16xf32>
    %12 = vector.shape_cast %11 : vector<4x16xf32> to vector<4x16x1xf32>
    %cst_7 = arith.constant 7.812500e-03 : f32
    %13 = vector.broadcast %cst_7 : f32 to vector<4x16x1xf32>
    %14 = arith.mulf %9, %13 : vector<4x16x1xf32>
    %cst_8 = arith.constant 7.812500e-03 : f32
    %15 = vector.broadcast %cst_8 : f32 to vector<4x16x1xf32>
    %16 = arith.mulf %12, %15 : vector<4x16x1xf32>
    %17 = arith.mulf %14, %14 : vector<4x16x1xf32>
    %18 = arith.subf %16, %17 : vector<4x16x1xf32>
    %c0_9 = arith.constant 0 : index
    %c0_10 = arith.constant 0 : index
    %19 = vector.load %arg3[%c0_9, %c0_10] : memref<2x128xf32, #tpu.memory_space<vmem>>, vector<2x128xf32>
    %20 = vector.extract_strided_slice %19 {offsets = [0, 0], sizes = [1, 128], strides = [1, 1]} : vector<2x128xf32> to vector<1x128xf32>
    %21 = vector.shape_cast %20 : vector<1x128xf32> to vector<1x1x128xf32>
    %22 = vector.extract_strided_slice %19 {offsets = [1, 0], sizes = [1, 128], strides = [1, 1]} : vector<2x128xf32> to vector<1x128xf32>
    %23 = vector.shape_cast %22 : vector<1x128xf32> to vector<1x1x128xf32>
    %24 = vector.broadcast %14 : vector<4x16x1xf32> to vector<4x16x128xf32>
    %25 = arith.subf %7, %24 : vector<4x16x128xf32>
    %cst_11 = arith.constant 9.99999974E-6 : f32
    %26 = vector.broadcast %cst_11 : f32 to vector<4x16x1xf32>
    %27 = arith.addf %18, %26 : vector<4x16x1xf32>
    %28 = math.rsqrt %27 : vector<4x16x1xf32>
    %29 = vector.broadcast %28 : vector<4x16x1xf32> to vector<4x16x128xf32>
    %30 = arith.mulf %25, %29 : vector<4x16x128xf32>
    %31 = vector.broadcast %21 : vector<1x1x128xf32> to vector<4x16x128xf32>
    %32 = arith.mulf %30, %31 : vector<4x16x128xf32>
    %33 = vector.broadcast %23 : vector<1x1x128xf32> to vector<4x16x128xf32>
    %34 = arith.addf %32, %33 : vector<4x16x128xf32>
    %cst_12 = arith.constant dense<0.000000e+00> : vector<4x128xf32>
    %35 = vector.multi_reduction <add>, %34, %cst_12 [1] : vector<4x16x128xf32> to vector<4x128xf32>
    %cst_13 = arith.constant 1.600000e+01 : f32
    %36 = vector.broadcast %cst_13 : f32 to vector<4x128xf32>
    %37 = arith.divf %35, %36 : vector<4x128xf32>
    %38 = arith.truncf %37 : vector<4x128xf32> to vector<4x128xbf16>
    %c0_14 = arith.constant 0 : index
    %c0_15 = arith.constant 0 : index
    %39 = vector.load %arg4[%c0_14, %c0_15] : memref<128x128xbf16, #tpu.memory_space<vmem>>, vector<128x128xbf16>
    %cst_16 = arith.constant dense<0.000000e+00> : vector<4x128xf32>
    %40 = tpu.matmul %38, %39, %cst_16 {dimension_numbers = #tpu.dot_dimension_numbers<[1], [0], [0], [1], [0, 0, 1, 1], [], []>} : vector<4x128xbf16>, vector<128x128xbf16>, vector<4x128xf32> -> vector<4x128xf32>
    %41 = arith.mulf %40, %40 : vector<4x128xf32>
    %cst_17 = arith.constant dense<0.000000e+00> : vector<4xf32>
    %42 = vector.multi_reduction <add>, %41, %cst_17 [1] : vector<4x128xf32> to vector<4xf32>
    %43 = vector.shape_cast %42 : vector<4xf32> to vector<4x1xf32>
    %44 = math.rsqrt %43 : vector<4x1xf32>
    %45 = vector.broadcast %44 : vector<4x1xf32> to vector<4x128xf32>
    %46 = arith.mulf %40, %45 : vector<4x128xf32>
    %c0_18 = arith.constant 0 : index
    %c0_19 = arith.constant 0 : index
    %47 = vector.load %arg5[%c0_18, %c0_19] : memref<4x128xf32, #tpu.memory_space<vmem>>, vector<4x128xf32>
    tpu.vector_store %arg5[%c0_18, %c0_19], %46 {strides = array<i32>} : memref<4x128xf32, #tpu.memory_space<vmem>>, vector<4x128xf32>,
    return
  }
}

</mosaic_0001>

<llo_original>
// kernel: nlp_embedding_forward.1
$region0: #{nlp_embedding_forward.1}
  #allocation0 [shape = 'u32[]', space=smem, size = 0x4, offset = 0x4, fixed_abs, tag = 'smem constant byte address 0x4 - core index']
  #allocation1 [shape = 'u32[144,128]{1,0:T(1,128)}', space=vmem, size = 0x12000, scoped, tag = 'internal scratch']
  %s0 = inlined_call_operand.vmem [shape: bf16[64,64], index: 0, kind: input, shape index: {}]
  %s1 = inlined_call_operand.vmem [shape: bf16[64,128], index: 1, kind: input, shape index: {}]
  %s2 = inlined_call_operand.vmem [shape: f32[16,128], index: 2, kind: input, shape index: {}]
  %s3 = inlined_call_operand.vmem [shape: f32[2,128], index: 3, kind: input, shape index: {}]
  %s4 = inlined_call_operand.vmem [shape: bf16[128,128], index: 4, kind: input, shape index: {}]
  %s5 = inlined_call_operand.vmem [shape: f32[4,128], index: 5, kind: output, shape index: {}]
  %s6 = sld [smem:[#allocation0]]
  $region30: #{nlp_embedding_forward.1} parent=0
    _
  %s8 = ssub.s32 1, %s6
  %s9 = scalar_select 0, %s8, %s6
  // Predicated region
  $region2: #{nlp_embedding_forward.1} parent=0 // pred_check
    _
  $region3: #{nlp_embedding_forward.1} parent=0 // pred_check_branch
    %11 = sbr.rel (0) target = $region5
  $region4: #{nlp_embedding_forward.1} parent=0 // pred_region
    _
  $region5: #{nlp_embedding_forward.1} parent=0 // pred_fallthru
    _
  // Predicated region
  $region6: #{nlp_embedding_forward.1} parent=0 // pred_check
    _
  $region7: #{nlp_embedding_forward.1} parent=0 // pred_check_branch
    %13 = sbr.rel (0) target = $region9
  $region8: #{nlp_embedding_forward.1} parent=0 // pred_region
    _
  $region9: #{nlp_embedding_forward.1} parent=0 // pred_fallthru
    _
  // Predicated region
  $region10: #{nlp_embedding_forward.1} parent=0 // pred_check
    _
  $region11: #{nlp_embedding_forward.1} parent=0 // pred_check_branch
    %15 = sbr.rel (0) target = $region13
  $region12: #{nlp_embedding_forward.1} parent=0 // pred_region
    _
  $region13: #{nlp_embedding_forward.1} parent=0 // pred_fallthru
    _
  // Predicated region
  $region14: #{nlp_embedding_forward.1} parent=0 // pred_check
    _
  $region15: #{nlp_embedding_forward.1} parent=0 // pred_check_branch
    %17 = sbr.rel (0) target = $region17
  $region16: #{nlp_embedding_forward.1} parent=0 // pred_region
    _
  $region17: #{nlp_embedding_forward.1} parent=0 // pred_fallthru
    _
  // Predicated region
  $region18: #{nlp_embedding_forward.1} parent=0 // pred_check
    _
  $region19: #{nlp_embedding_forward.1} parent=0 // pred_check_branch
    %19 = sbr.rel (0) target = $region21
  $region20: #{nlp_embedding_forward.1} parent=0 // pred_region
    _
  $region21: #{nlp_embedding_forward.1} parent=0 // pred_fallthru
    _
  %v21 = vld [vmem:[%s0] sm:$0xf]
  %v22 = vld [vmem:[%s0 + $0x4] sm:$0xf]
  %v23 = vld [vmem:[%s0 + $0x8] sm:$0xf]
  %v24 = vld [vmem:[%s0 + $0xc] sm:$0xf]
  %v25 = vld [vmem:[%s0 + $0x10] sm:$0xf]
  %v26 = vld [vmem:[%s0 + $0x14] sm:$0xf]
  %v27 = vld [vmem:[%s0 + $0x18] sm:$0xf]
  %v28 = vld [vmem:[%s0 + $0x1c] sm:$0xf]
  %v29 = vld [vmem:[%s1] sm:$0xf]
  %v30 = vld [vmem:[%s1 + $0x4] sm:$0xf]
  %v31 = vld [vmem:[%s1 + $0x8] sm:$0xf]
  %v32 = vld [vmem:[%s1 + $0xc] sm:$0xf]
  %v33 = vld [vmem:[%s1 + $0x10] sm:$0xf]
  %v34 = vld [vmem:[%s1 + $0x14] sm:$0xf]
  %v35 = vld [vmem:[%s1 + $0x18] sm:$0xf]
  %v36 = vld [vmem:[%s1 + $0x1c] sm:$0xf]
  %v45 = vunpack.c.l.b16 %v21
  %v46 = vunpack.c.l.b16 %v22
  %v47 = vunpack.c.l.b16 %v23
  %v48 = vunpack.c.l.b16 %v24
  %v49 = vunpack.c.l.b16 %v25
  %v50 = vunpack.c.l.b16 %v26
  %v51 = vunpack.c.l.b16 %v27
  %v52 = vunpack.c.l.b16 %v28
  %v53 = vpack.c.b16 %v46, %v45
  %v54 = vpack.c.b16 %v48, %v47
  %v55 = vpack.c.b16 %v50, %v49
  %v56 = vpack.c.b16 %v52, %v51
  %v65 = vunpack.c.l.b16 %v29
  %v66 = vunpack.c.l.b16 %v30
  %v67 = vunpack.c.l.b16 %v31
  %v68 = vunpack.c.l.b16 %v32
  %v69 = vunpack.c.l.b16 %v33
  %v70 = vunpack.c.l.b16 %v34
  %v71 = vunpack.c.l.b16 %v35
  %v72 = vunpack.c.l.b16 %v36
  %v73 = vpack.c.b16 %v66, %v65
  %v74 = vpack.c.b16 %v68, %v67
  %v75 = vpack.c.b16 %v70, %v69
  %v76 = vpack.c.b16 %v72, %v71
  %vm81 = vcmask 523264
  %v83 = vsel %vm81, %v53, 0
  %v86 = vsel %vm81, %v54, 0
  %v89 = vsel %vm81, %v55, 0
  %v92 = vsel %vm81, %v56, 0
  %94 = vmatprep.subr.bf16.mxu0 0
  %95 = vmatpush1.bf16.msra.mxu0 0
  %96 = vmatprep.subr.bf16.mxu0 0
  %97 = vmatpush1.bf16.msra.mxu0 0
  %98 = vmatprep.subr.bf16.mxu0 0
  %99 = vmatpush1.bf16.msra.mxu0 0
  %100 = vmatprep.subr.bf16.mxu0 0
  %101 = vmatpush1.bf16.msra.mxu0 0
  %102 = vmatprep.subr.bf16.mxu0 0
  %103 = vmatpush1.bf16.msra.mxu0 %v76
  %104 = vmatprep.subr.bf16.mxu0 0
  %105 = vmatpush1.bf16.msra.mxu0 %v75
  %106 = vmatprep.subr.bf16.mxu0 0
  %107 = vmatpush1.bf16.msra.mxu0 %v74
  %108 = vmatprep.subr.bf16.mxu0 0
  %109 = vmatpush1.bf16.msra.mxu0 %v73
  %110 = vmatprep.subr.bf16.mxu0 0
  %111 = vmatpush2.bf16.msra.mxu0 0
  %112 = vmatprep.subr.bf16.mxu0 0
  %113 = vmatpush2.bf16.msra.mxu0 0
  %114 = vmatprep.subr.bf16.mxu0 0
  %115 = vmatpush2.bf16.msra.mxu0 0
  %116 = vmatprep.subr.bf16.mxu0 0
  %117 = vmatpush2.bf16.msra.mxu0 0
  %118 = vmatprep.subr.bf16.mxu0 0
  %119 = vmatpush2.bf16.msra.mxu0 0
  %120 = vmatprep.subr.bf16.mxu0 0
  %121 = vmatpush2.bf16.msra.mxu0 0
  %122 = vmatprep.subr.bf16.mxu0 0
  %123 = vmatpush2.bf16.msra.mxu0 0
  %124 = vmatprep.subr.bf16.mxu0 0
  %125 = vmatpush2.bf16.msra.mxu0 0
  %126 = vmatprep.mubr.bf16.mxu0 0
  %127 = vmatmul.mubr.bf16.gmra.mxu0 %v83
  %v128 = vpop.f32.mrf.mxu0
  %v129 = vadd.f32 0.0, %v128
  %v130 = vpop.f32.mrf.mxu0
  %v131 = vpop.f32.mrf.mxu0
  %v132 = vadd.f32 0.0, %v131
  %v133 = vpop.f32.mrf.mxu0
  %134 = vmatprep.mubr.bf16.mxu0 0
  %135 = vmatmul.mubr.bf16.gmra.mxu0 %v86
  %v136 = vpop.f32.mrf.mxu0
  %v137 = vadd.f32 0.0, %v136
  %v138 = vpop.f32.mrf.mxu0
  %v139 = vpop.f32.mrf.mxu0
  %v140 = vadd.f32 0.0, %v139
  %v141 = vpop.f32.mrf.mxu0
  %142 = vmatprep.mubr.bf16.mxu0 0
  %143 = vmatmul.mubr.bf16.gmra.mxu0 %v89
  %v144 = vpop.f32.mrf.mxu0
  %v145 = vadd.f32 0.0, %v144
  %v146 = vpop.f32.mrf.mxu0
  %v147 = vpop.f32.mrf.mxu0
  %v148 = vadd.f32 0.0, %v147
  %v149 = vpop.f32.mrf.mxu0
  %150 = vmatprep.mubr.bf16.mxu0 0
  %151 = vmatmul.mubr.bf16.gmra.mxu0 %v92
  %v152 = vpop.f32.mrf.mxu0
  %v153 = vadd.f32 0.0, %v152
  %v154 = vpop.f32.mrf.mxu0
  %v155 = vpop.f32.mrf.mxu0
  %v156 = vadd.f32 0.0, %v155
  %v157 = vpop.f32.mrf.mxu0
  %158 = vdwg.mxu0
  %v159 = vld [vmem:[%s2] sm:$0xff]
  %v160 = vld [vmem:[%s2 + $0x8] sm:$0xff]
  %v161 = vadd.f32 %v129, %v159
  %v162 = vadd.f32 %v132, %v160
  %v163 = vadd.f32 %v137, %v159
  %v164 = vadd.f32 %v140, %v160
  %v165 = vadd.f32 %v145, %v159
  %v166 = vadd.f32 %v148, %v160
  %v167 = vadd.f32 %v153, %v159
  %v168 = vadd.f32 %v156, %v160
  %169 = vadd.xlane.f32.xlu0 %v161
  %v170 = vpop.xlane.xlu0 %169
  %171 = vadd.xlane.f32.xlu0 %v162
  %v172 = vpop.xlane.xlu0 %171
  %173 = vadd.xlane.f32.xlu0 %v163
  %v174 = vpop.xlane.xlu0 %173
  %175 = vadd.xlane.f32.xlu0 %v164
  %v176 = vpop.xlane.xlu0 %175
  %177 = vadd.xlane.f32.xlu0 %v165
  %v178 = vpop.xlane.xlu0 %177
  %179 = vadd.xlane.f32.xlu0 %v166
  %v180 = vpop.xlane.xlu0 %179
  %181 = vadd.xlane.f32.xlu0 %v167
  %v182 = vpop.xlane.xlu0 %181
  %183 = vadd.xlane.f32.xlu0 %v168
  %v184 = vpop.xlane.xlu0 %183
  %v185 = vmul.f32 %v161, %v161
  %v186 = vmul.f32 %v162, %v162
  %v187 = vmul.f32 %v163, %v163
  %v188 = vmul.f32 %v164, %v164
  %v189 = vmul.f32 %v165, %v165
  %v190 = vmul.f32 %v166, %v166
  %v191 = vmul.f32 %v167, %v167
  %v192 = vmul.f32 %v168, %v168
  %193 = vadd.xlane.f32.xlu0 %v185
  %v194 = vpop.xlane.xlu0 %193
  %195 = vadd.xlane.f32.xlu0 %v186
  %v196 = vpop.xlane.xlu0 %195
  %197 = vadd.xlane.f32.xlu0 %v187
  %v198 = vpop.xlane.xlu0 %197
  %199 = vadd.xlane.f32.xlu0 %v188
  %v200 = vpop.xlane.xlu0 %199
  %201 = vadd.xlane.f32.xlu0 %v189
  %v202 = vpop.xlane.xlu0 %201
  %203 = vadd.xlane.f32.xlu0 %v190
  %v204 = vpop.xlane.xlu0 %203
  %205 = vadd.xlane.f32.xlu0 %v191
  %v206 = vpop.xlane.xlu0 %205
  %207 = vadd.xlane.f32.xlu0 %v192
  %v208 = vpop.xlane.xlu0 %207
  %v209 = vmul.f32 %v170, 0.0078125
  %v210 = vmul.f32 %v172, 0.0078125
  %v211 = vmul.f32 %v174, 0.0078125
  %v212 = vmul.f32 %v176, 0.0078125
  %v213 = vmul.f32 %v178, 0.0078125
  %v214 = vmul.f32 %v180, 0.0078125
  %v215 = vmul.f32 %v182, 0.0078125
  %v216 = vmul.f32 %v184, 0.0078125
  %v217 = vmul.f32 %v194, 0.0078125
  %v218 = vmul.f32 %v196, 0.0078125
  %v219 = vmul.f32 %v198, 0.0078125
  %v220 = vmul.f32 %v200, 0.0078125
  %v221 = vmul.f32 %v202, 0.0078125
  %v222 = vmul.f32 %v204, 0.0078125
  %v223 = vmul.f32 %v206, 0.0078125
  %v224 = vmul.f32 %v208, 0.0078125
  %v225 = vmul.f32 %v209, %v209
  %v226 = vmul.f32 %v210, %v210
  %v227 = vmul.f32 %v211, %v211
  %v228 = vmul.f32 %v212, %v212
  %v229 = vmul.f32 %v213, %v213
  %v230 = vmul.f32 %v214, %v214
  %v231 = vmul.f32 %v215, %v215
  %v232 = vmul.f32 %v216, %v216
  %v233 = vsub.f32 %v217, %v225
  %v234 = vsub.f32 %v218, %v226
  %v235 = vsub.f32 %v219, %v227
  %v236 = vsub.f32 %v220, %v228
  %v237 = vsub.f32 %v221, %v229
  %v238 = vsub.f32 %v222, %v230
  %v239 = vsub.f32 %v223, %v231
  %v240 = vsub.f32 %v224, %v232
  %v241 = vld [vmem:[%s3] sm:$0x3]
  %v242 = vsub.f32 %v161, %v209
  %v243 = vsub.f32 %v162, %v210
  %v244 = vsub.f32 %v163, %v211
  %v245 = vsub.f32 %v164, %v212
  %v246 = vsub.f32 %v165, %v213
  %v247 = vsub.f32 %v166, %v214
  %v248 = vsub.f32 %v167, %v215
  %v249 = vsub.f32 %v168, %v216
  %v250 = vadd.f32 %v233, 1e-05
  %v251 = vadd.f32 %v234, 1e-05
  %v252 = vadd.f32 %v235, 1e-05
  %v253 = vadd.f32 %v236, 1e-05
  %v254 = vadd.f32 %v237, 1e-05
  %v255 = vadd.f32 %v238, 1e-05
  %v256 = vadd.f32 %v239, 1e-05
  %v257 = vadd.f32 %v240, 1e-05
  %v258 = vrsqrt.pop %v250
  %v259 = vrsqrt.pop %v251
  %v260 = vrsqrt.pop %v252
  %v261 = vrsqrt.pop %v253
  %v262 = vrsqrt.pop %v254
  %v263 = vrsqrt.pop %v255
  %v264 = vrsqrt.pop %v256
  %v265 = vrsqrt.pop %v257
  %v266 = vmul.f32 %v242, %v258
  %v267 = vmul.f32 %v243, %v259
  %v268 = vmul.f32 %v244, %v260
  %v269 = vmul.f32 %v245, %v261
  %v270 = vmul.f32 %v246, %v262
  %v271 = vmul.f32 %v247, %v263
  %v272 = vmul.f32 %v248, %v264
  %v273 = vmul.f32 %v249, %v265
  %v274 = vlaneseq
  %v275 = vshrl.u32 %v274, 7
  %v276 = vsub.s32 0, %v275
  %v277 = vrot.slane %v241, %v276
  %v278 = vmul.f32 %v266, %v277
  %v279 = vmul.f32 %v267, %v277
  %v280 = vmul.f32 %v268, %v277
  %v281 = vmul.f32 %v269, %v277
  %v282 = vmul.f32 %v270, %v277
  %v283 = vmul.f32 %v271, %v277
  %v284 = vmul.f32 %v272, %v277
  %v285 = vmul.f32 %v273, %v277
  %v286 = vlaneseq
  %v287 = vshrl.u32 %v286, 7
  %v288 = vsub.s32 1, %v287
  %v289 = vrot.slane %v241, %v288
  %v290 = vadd.f32 %v278, %v289
  %v291 = vadd.f32 %v279, %v289
  %v292 = vadd.f32 %v280, %v289
  %v293 = vadd.f32 %v281, %v289
  %v294 = vadd.f32 %v282, %v289
  %v295 = vadd.f32 %v283, %v289
  %v296 = vadd.f32 %v284, %v289
  %v297 = vadd.f32 %v285, %v289
  %v298 = vadd.f32 %v290, %v291
  %v299 = vrot.slane %v298, 4
  %v300 = vadd.f32 %v298, %v299
  %v301 = vrot.slane %v300, 2
  %v302 = vadd.f32 %v300, %v301
  %v303 = vrot.slane %v302, 1
  %v304 = vadd.f32 %v302, %v303
  %v305 = vadd.f32 %v292, %v293
  %v306 = vrot.slane %v305, 4
  %v307 = vadd.f32 %v305, %v306
  %v308 = vrot.slane %v307, 2
  %v309 = vadd.f32 %v307, %v308
  %v310 = vrot.slane %v309, 1
  %v311 = vadd.f32 %v309, %v310
  %v312 = vadd.f32 %v294, %v295
  %v313 = vrot.slane %v312, 4
  %v314 = vadd.f32 %v312, %v313
  %v315 = vrot.slane %v314, 2
  %v316 = vadd.f32 %v314, %v315
  %v317 = vrot.slane %v316, 1
  %v318 = vadd.f32 %v316, %v317
  %v319 = vadd.f32 %v296, %v297
  %v320 = vrot.slane %v319, 4
  %v321 = vadd.f32 %v319, %v320
  %v322 = vrot.slane %v321, 2
  %v323 = vadd.f32 %v321, %v322
  %v324 = vrot.slane %v323, 1
  %v325 = vadd.f32 %v323, %v324
  %v326 = vrcp.pop 16.0
  %v327 = vmul.f32 %v304, %v326
  %v328 = vmul.f32 %v311, %v326
  %v329 = vmul.f32 %v318, %v326
  %v330 = vmul.f32 %v325, %v326
  %v331 = vpack.c.bf16 %v327, %v327
  %v332 = vpack.c.bf16 %v328, %v328
  %v333 = vpack.c.bf16 %v329, %v329
  %v334 = vpack.c.bf16 %v330, %v330
  %v335 = vld [vmem:[%s4] sm:$0xf]
  %v336 = vld [vmem:[%s4 + $0x4] sm:$0xf]
  %v337 = vld [vmem:[%s4 + $0x8] sm:$0xf]
  %v338 = vld [vmem:[%s4 + $0xc] sm:$0xf]
  %v339 = vld [vmem:[%s4 + $0x10] sm:$0xf]
  %v340 = vld [vmem:[%s4 + $0x14] sm:$0xf]
  %v341 = vld [vmem:[%s4 + $0x18] sm:$0xf]
  %v342 = vld [vmem:[%s4 + $0x1c] sm:$0xf]
  %v343 = vld [vmem:[%s4 + $0x20] sm:$0xf]
  %v344 = vld [vmem:[%s4 + $0x24] sm:$0xf]
  %v345 = vld [vmem:[%s4 + $0x28] sm:$0xf]
  %v346 = vld [vmem:[%s4 + $0x2c] sm:$0xf]
  %v347 = vld [vmem:[%s4 + $0x30] sm:$0xf]
  %v348 = vld [vmem:[%s4 + $0x34] sm:$0xf]
  %v349 = vld [vmem:[%s4 + $0x38] sm:$0xf]
  %v350 = vld [vmem:[%s4 + $0x3c] sm:$0xf]
  %v355 = vunpack.c.l.b16 %v331
  %v356 = vunpack.c.l.b16 %v332
  %v357 = vunpack.c.l.b16 %v333
  %v358 = vunpack.c.l.b16 %v334
  %vm359 = vcmask 1041409
  %v360 = vsel %vm359, %v356, %v355
  %vm361 = vcmask 1042434
  %v362 = vsel %vm361, %v357, %v360
  %vm363 = vcmask 1043459
  %v364 = vsel %vm363, %v358, %v362
  %v365 = vpack.c.b16 %v364, %v364
  %v383 = vunpack.c.l.b16 %v335
  %v384 = vunpack.c.l.b16 %v336
  %v385 = vunpack.c.l.b16 %v337
  %v386 = vunpack.c.l.b16 %v338
  %v387 = vunpack.c.l.b16 %v339
  %v388 = vunpack.c.l.b16 %v340
  %v389 = vunpack.c.l.b16 %v341
  %v390 = vunpack.c.l.b16 %v342
  %v391 = vunpack.c.l.b16 %v343
  %v392 = vunpack.c.l.b16 %v344
  %v393 = vunpack.c.l.b16 %v345
  %v394 = vunpack.c.l.b16 %v346
  %v395 = vunpack.c.l.b16 %v347
  %v396 = vunpack.c.l.b16 %v348
  %v397 = vunpack.c.l.b16 %v349
  %v398 = vunpack.c.l.b16 %v350
  %v399 = vpack.c.b16 %v384, %v383
  %v400 = vpack.c.b16 %v386, %v385
  %v401 = vpack.c.b16 %v388, %v387
  %v402 = vpack.c.b16 %v390, %v389
  %v403 = vpack.c.b16 %v392, %v391
  %v404 = vpack.c.b16 %v394, %v393
  %v405 = vpack.c.b16 %v396, %v395
  %v406 = vpack.c.b16 %v398, %v397
  %415 = vmatprep.subr.bf16.mxu0 0
  %416 = vmatpush1.bf16.msra.mxu0 %v406
  %417 = vmatprep.subr.bf16.mxu0 0
  %418 = vmatpush1.bf16.msra.mxu0 %v405
  %419 = vmatprep.subr.bf16.mxu0 0
  %420 = vmatpush1.bf16.msra.mxu0 %v404
  %421 = vmatprep.subr.bf16.mxu0 0
  %422 = vmatpush1.bf16.msra.mxu0 %v403
  %423 = vmatprep.subr.bf16.mxu0 0
  %424 = vmatpush1.bf16.msra.mxu0 %v402
  %425 = vmatprep.subr.bf16.mxu0 0
  %426 = vmatpush1.bf16.msra.mxu0 %v401
  %427 = vmatprep.subr.bf16.mxu0 0
  %428 = vmatpush1.bf16.msra.mxu0 %v400
  %429 = vmatprep.subr.bf16.mxu0 0
  %430 = vmatpush1.bf16.msra.mxu0 %v399
  %431 = vmatprep.subr.bf16.mxu0 0
  %432 = vmatpush2.bf16.msra.mxu0 0
  %433 = vmatprep.subr.bf16.mxu0 0
  %434 = vmatpush2.bf16.msra.mxu0 0
  %435 = vmatprep.subr.bf16.mxu0 0
  %436 = vmatpush2.bf16.msra.mxu0 0
  %437 = vmatprep.subr.bf16.mxu0 0
  %438 = vmatpush2.bf16.msra.mxu0 0
  %439 = vmatprep.subr.bf16.mxu0 0
  %440 = vmatpush2.bf16.msra.mxu0 0
  %441 = vmatprep.subr.bf16.mxu0 0
  %442 = vmatpush2.bf16.msra.mxu0 0
  %443 = vmatprep.subr.bf16.mxu0 0
  %444 = vmatpush2.bf16.msra.mxu0 0
  %445 = vmatprep.subr.bf16.mxu0 0
  %446 = vmatpush2.bf16.msra.mxu0 0
  %447 = vmatprep.mubr.bf16.mxu0 0
  %448 = vmatmul.mubr.bf16.gmra.mxu0 %v365
  %v449 = vpop.f32.mrf.mxu0
  %v450 = vadd.f32 0.0, %v449
  %v451 = vpop.f32.mrf.mxu0
  %v452 = vpop.f32.mrf.mxu0
  %v453 = vpop.f32.mrf.mxu0
  %454 = vdwg.mxu0
  %v455 = vmul.f32 %v450, %v450
  %vm456 = vcmask 1043456
  %v457 = vsel %vm456, %v455, 0.0
  %458 = vadd.xlane.f32.xlu0 %v457
  %v459 = vpop.xlane.xlu0 %458
  %v460 = vrsqrt.pop %v459
  %v461 = vmul.f32 %v450, %v460
  %462 = vst [vmem:[%s5] sm:$0xf] %v461
  // Predicated region
  $region22: #{nlp_embedding_forward.1} parent=0 // pred_check
    _
  $region23: #{nlp_embedding_forward.1} parent=0 // pred_check_branch
    %464 = sbr.rel (0) target = $region25
  $region24: #{nlp_embedding_forward.1} parent=0 // pred_region
    _
  $region25: #{nlp_embedding_forward.1} parent=0 // pred_fallthru
    _
  // Predicated region
  $region26: #{nlp_embedding_forward.1} parent=0 // pred_check
    _
  $region27: #{nlp_embedding_forward.1} parent=0 // pred_check_branch
    %466 = sbr.rel (0) target = $region29
  $region28: #{nlp_embedding_forward.1} parent=0 // pred_region
    _
  $region29: #{nlp_embedding_forward.1} parent=0 // pred_fallthru
    _

</llo_original>
